<compile_context>
chip_gen: v6e
topology: v6e:2x2x1
jax: 0.10.0
libtpu: 0.0.40
codegen_flags: <defaults>
</compile_context>

<pallas_src>
import functools

import jax
import jax.numpy as jnp
from jax.experimental import pallas as pl
from jax.experimental.pallas import tpu as pltpu

LANE = 128
SUBLANE = 8


def _round_up(n, m):
    return ((n + m - 1) // m) * m


def _pad_to(arr, shape):
    pads = [(0, t - s) for s, t in zip(arr.shape, shape)]
    return jnp.pad(arr, pads)


def _fused_chain_kernel(*refs, relu_flags):
    """Fused forward over all clients.

    refs = (x_ref, w0_ref, b0_ref, w1_ref, b1_ref, ..., o_ref)
      x_ref : (B_pad, IN_pad)        f32   (lane-dense, zero-padded)
      wi_ref: (IN_pad_i, OUT_pad_i)  bf16  (pre-transposed + zero-padded)
      bi_ref: (1, OUT_pad_i)         f32
      o_ref : (B_pad, OUT_pad_last)  f32   (lane-dense -> full-width vst)

    The inter-layer activation stays on-chip (vregs/VMEM) — never written to HBM.
    """
    x_ref = refs[0]
    o_ref = refs[-1]

    h = x_ref[...]  # f32
    for li, apply_relu in enumerate(relu_flags):
        w_ref = refs[1 + 2 * li]
        b_ref = refs[2 + 2 * li]
        # bf16 operands feed the MXU natively; accumulate in f32.
        acc = jnp.dot(h.astype(jnp.bfloat16), w_ref[...],
                      preferred_element_type=jnp.float32)
        h = acc + b_ref[...]              # f32 epilogue (VPU), broadcast (1, OUT_pad)
        if apply_relu:
            h = jnp.maximum(h, 0.0)
    o_ref[...] = h.astype(o_ref.dtype)


def fused_splitnn_forward(x_pad, weights_bf16, biases_f32, relu_flags):
    """Single Pallas kernel computing the whole (padded) client chain.

    weights_bf16: list of (in_pad, out_pad) bf16 matrices (pre-transposed, zero-padded)
    biases_f32  : list of (1, out_pad) f32 biases (zero-padded)
    relu_flags  : static tuple[bool] — whether each layer has a ReLU epilogue.
    """
    batch_pad = x_pad.shape[0]
    out_pad = weights_bf16[-1].shape[1]

    operands = [x_pad]
    flops = 0
    bytes_accessed = x_pad.size * x_pad.dtype.itemsize
    for w, b in zip(weights_bf16, biases_f32):
        operands += [w, b]
        flops += 2 * batch_pad * w.shape[0] * w.shape[1]
        bytes_accessed += w.size * w.dtype.itemsize + b.size * b.dtype.itemsize
    bytes_accessed += batch_pad * out_pad * x_pad.dtype.itemsize

    kernel = functools.partial(_fused_chain_kernel, relu_flags=tuple(relu_flags))

    return pl.pallas_call(
        kernel,
        out_shape=jax.ShapeDtypeStruct((batch_pad, out_pad), x_pad.dtype),
        # Gridless: whole arrays land in VMEM as single (lane-dense) blocks.
        in_specs=[pl.BlockSpec(memory_space=pltpu.MemorySpace.VMEM)] * len(operands),
        out_specs=pl.BlockSpec(memory_space=pltpu.MemorySpace.VMEM),
        compiler_params=pltpu.CompilerParams(
            # Tiny footprint; explicit limit is safe on v5e/v6e/v7x alike.
            vmem_limit_bytes=16 * 1024 * 1024,
        ),
        cost_estimate=pl.CostEstimate(
            flops=flops, transcendentals=0, bytes_accessed=bytes_accessed
        ),
    )(*operands)


class PallasSplitNN:
    """Mirrors SplitNN.forward: sequentially apply each client's upload().

    The whole chain runs as ONE fused Pallas kernel.  All static layout work
    (weight transpose, zero-padding to 128 lanes, bf16 cast, bias reshape) is
    hoisted to construction time; the jitted wrapper only pads x and slices
    the lane-dense output back to (batch, out_features) — both fused by XLA.
    """

    def __init__(self, client_params):
        # client_params: list of (weight (out,in), bias (out,), apply_relu)
        in_features = client_params[0][0].shape[1]
        self._in_features = in_features
        self._in_pad = _round_up(in_features, LANE)
        self._out_features = client_params[-1][0].shape[0]

        weights = []
        biases = []
        relu_flags = []
        prev_pad = self._in_pad
        for (w, b, relu) in client_params:
            out_f, cur_in = w.shape
            out_pad = _round_up(out_f, LANE)
            # (out,in) -> (in,out), zero-pad to (prev_pad, out_pad), cast bf16 once.
            w_io = jnp.transpose(w).astype(jnp.float32)          # (in, out)
            w_io = _pad_to(w_io, (prev_pad, out_pad)).astype(jnp.bfloat16)
            b2 = _pad_to(b.reshape(1, -1).astype(jnp.float32), (1, out_pad))
            weights.append(w_io)
            biases.append(b2)
            relu_flags.append(bool(relu))
            prev_pad = out_pad

        self._weights = weights
        self._biases = biases
        self._relu_flags = tuple(relu_flags)

        in_pad = self._in_pad
        out_features = self._out_features
        relu_flags_t = self._relu_flags

        def _fwd(x, ws, bs):
            batch = x.shape[0]
            batch_pad = _round_up(batch, SUBLANE)
            # Lane/sublane-dense input slab (zero padding is inert for Linear).
            x_pad = jnp.zeros((batch_pad, in_pad), dtype=x.dtype)
            x_pad = x_pad.at[:batch, : x.shape[1]].set(x)
            out_full = fused_splitnn_forward(x_pad, ws, bs, relu_flags_t)
            # Slice back to the real logical shape; XLA fuses this away.
            return out_full[:batch, :out_features]

        self._forward = jax.jit(_fwd)
        self.recent_output = None

    def forward(self, x):
        out = self._forward(x, self._weights, self._biases)
        self.recent_output = out
        return out

    # TODO(synk): backward()/backward_gradient()/step() are training-loop glue
    # around autograd + optimizers; only the forward hot path is kernelized.


def reference_forward(x, client_params):
    h = x
    for (w, b, relu) in client_params:
        h = h @ w.T + b
        if relu:
            h = jnp.maximum(h, 0.0)
    return h


if __name__ == "__main__":
    key = jax.random.PRNGKey(0)
    batch, in_features, hidden, out_features = 8, 16, 32, 4

    k_x, k_w1, k_b1, k_w2, k_b2 = jax.random.split(key, 5)
    x = jax.random.normal(k_x, (batch, in_features), dtype=jnp.float32)

    # Deterministic parameter init (PyTorch nn.Linear shapes: weight (out, in)).
    w1 = jax.random.normal(k_w1, (hidden, in_features), dtype=jnp.float32) * 0.1
    b1 = jax.random.normal(k_b1, (hidden,), dtype=jnp.float32) * 0.1
    w2 = jax.random.normal(k_w2, (out_features, hidden), dtype=jnp.float32) * 0.1
    b2 = jax.random.normal(k_b2, (out_features,), dtype=jnp.float32) * 0.1

    clients = [
        (w1, b1, True),    # client 0: Linear + ReLU
        (w2, b2, False),   # client 1: Linear
    ]

    model = PallasSplitNN(clients)
    out = model.forward(x)
    jax.block_until_ready(out)

    ref = reference_forward(x, clients)
    assert out.shape == (batch, out_features)
    # bf16 MXU inputs (f32 accumulation) -> loosen tolerance vs. f32 reference.
    assert jnp.allclose(out, ref, atol=2e-2, rtol=2e-2), (
        f"max abs err {jnp.max(jnp.abs(out - ref))}"
    )

    print("KERNEL_OK")
</pallas_src>

<mosaic_0001>
module attributes {stable_mosaic.version = 11 : i64} {
  func.func @_fused_chain_kernel(%arg0: memref<8x128xf32, #tpu.memory_space<vmem>>, %arg1: memref<128x128xbf16, #tpu.memory_space<vmem>>, %arg2: memref<1x128xf32, #tpu.memory_space<vmem>>, %arg3: memref<128x128xbf16, #tpu.memory_space<vmem>>, %arg4: memref<1x128xf32, #tpu.memory_space<vmem>>, %arg5: memref<8x128xf32, #tpu.memory_space<vmem>>) attributes {dimension_semantics = [], scalar_prefetch = 0 : i64, scratch_operands = 0 : i64, tpu.core_type = #tpu.core_type<tc>} {
    %c0 = arith.constant 0 : index
    %c0_0 = arith.constant 0 : index
    %0 = vector.load %arg0[%c0, %c0_0] : memref<8x128xf32, #tpu.memory_space<vmem>>, vector<8x128xf32>
    %1 = arith.truncf %0 : vector<8x128xf32> to vector<8x128xbf16>
    %c0_1 = arith.constant 0 : index
    %c0_2 = arith.constant 0 : index
    %2 = vector.load %arg1[%c0_1, %c0_2] : memref<128x128xbf16, #tpu.memory_space<vmem>>, vector<128x128xbf16>
    %cst = arith.constant dense<0.000000e+00> : vector<8x128xf32>
    %3 = tpu.matmul %1, %2, %cst {dimension_numbers = #tpu.dot_dimension_numbers<[1], [0], [0], [1], [0, 0, 1, 1], [], []>} : vector<8x128xbf16>, vector<128x128xbf16>, vector<8x128xf32> -> vector<8x128xf32>
    %c0_3 = arith.constant 0 : index
    %c0_4 = arith.constant 0 : index
    %4 = vector.load %arg2[%c0_3, %c0_4] : memref<1x128xf32, #tpu.memory_space<vmem>>, vector<1x128xf32>
    %5 = vector.broadcast %4 : vector<1x128xf32> to vector<8x128xf32>
    %6 = arith.addf %3, %5 : vector<8x128xf32>
    %cst_5 = arith.constant 0.000000e+00 : f32
    %7 = vector.broadcast %cst_5 : f32 to vector<8x128xf32>
    %8 = arith.maximumf %6, %7 : vector<8x128xf32>
    %9 = arith.truncf %8 : vector<8x128xf32> to vector<8x128xbf16>
    %c0_6 = arith.constant 0 : index
    %c0_7 = arith.constant 0 : index
    %10 = vector.load %arg3[%c0_6, %c0_7] : memref<128x128xbf16, #tpu.memory_space<vmem>>, vector<128x128xbf16>
    %cst_8 = arith.constant dense<0.000000e+00> : vector<8x128xf32>
    %11 = tpu.matmul %9, %10, %cst_8 {dimension_numbers = #tpu.dot_dimension_numbers<[1], [0], [0], [1], [0, 0, 1, 1], [], []>} : vector<8x128xbf16>, vector<128x128xbf16>, vector<8x128xf32> -> vector<8x128xf32>
    %c0_9 = arith.constant 0 : index
    %c0_10 = arith.constant 0 : index
    %12 = vector.load %arg4[%c0_9, %c0_10] : memref<1x128xf32, #tpu.memory_space<vmem>>, vector<1x128xf32>
    %13 = vector.broadcast %12 : vector<1x128xf32> to vector<8x128xf32>
    %14 = arith.addf %11, %13 : vector<8x128xf32>
    %c0_11 = arith.constant 0 : index
    %c0_12 = arith.constant 0 : index
    %15 = vector.load %arg5[%c0_11, %c0_12] : memref<8x128xf32, #tpu.memory_space<vmem>>, vector<8x128xf32>
    tpu.vector_store %arg5[%c0_11, %c0_12], %14 {strides = array<i32>} : memref<8x128xf32, #tpu.memory_space<vmem>>, vector<8x128xf32>,
    return
  }
}

</mosaic_0001>

<llo_original>
// kernel: _fwd.1
$region0: #{_fwd.1}
  #allocation0 [shape = 'u32[]', space=smem, size = 0x4, offset = 0x4, fixed_abs, tag = 'smem constant byte address 0x4 - core index']
  #allocation1 [shape = 'u32[144,128]{1,0:T(1,128)}', space=vmem, size = 0x12000, scoped, tag = 'internal scratch']
  %s0 = inlined_call_operand.vmem [shape: f32[8,128], index: 0, kind: input, shape index: {}]
  %s1 = inlined_call_operand.hbm [shape: bf16[128,128], index: 1, kind: input, shape index: {}]
  %s2 = inlined_call_operand.vmem [shape: f32[1,128], index: 2, kind: input, shape index: {}]
  %s3 = inlined_call_operand.hbm [shape: bf16[128,128], index: 3, kind: input, shape index: {}]
  %s4 = inlined_call_operand.vmem [shape: f32[1,128], index: 4, kind: input, shape index: {}]
  %s5 = inlined_call_operand.vmem [shape: f32[8,128], index: 5, kind: output, shape index: {}]
  %s6 = sld [smem:[#allocation0]]
  $region38: #{_fwd.1} parent=0
    _
  %s8 = ssub.s32 1, %s6
  %s9 = scalar_select 0, %s8, %s6
  $region1: #{_fwd.1} parent=0
    #allocation2 [shape = 'u8[32768]{0}', space=vmem, size = 0x8000, scoped, tag = 'input window, operand 1, single buffered']
    #allocation3 [shape = 's32[1]{0}', space=sflag, size = 0x4, scoped, tag = 'scoped memory for _fwd.1']
    #allocation4 [shape = 'u8[32768]{0}', space=vmem, size = 0x8000, scoped, tag = 'input window, operand 3, single buffered']
    #allocation5 [shape = 's32[1]{0}', space=sflag, size = 0x4, scoped, tag = 'scoped memory for _fwd.1']
    %10 = vsyncpa [#allocation3], 0
    %11 = vsyncpa [#allocation5], 0
    // Predicated region
    $region2: #{_fwd.1} parent=1 // pred_check
      _
    $region3: #{_fwd.1} parent=1 // pred_check_branch
      %13 = sbr.rel (0) target = $region5
    $region4: #{_fwd.1} parent=1 // pred_region
      _
    $region5: #{_fwd.1} parent=1 // pred_fallthru
      _
    // Predicated region
    $region6: #{_fwd.1} parent=1 // pred_check
      _
    $region7: #{_fwd.1} parent=1 // pred_check_branch
      %15 = sbr.rel (0) target = $region9
    $region8: #{_fwd.1} parent=1 // pred_region
      %s17 = ssub.s32 1024, 1024
      %18 = vsyncadd [#allocation3], %s17
      %s19 = sshll.u32 [#allocation2], 4
      %s20 = int_to_ptr.vmem [resolvable:$true] %s19
      %25 = dma.hbm_to_vmem [thread:$0]  %s1, 1024, %s20, [#allocation3], 64, 64, 4
    $region9: #{_fwd.1} parent=1 // pred_fallthru
      _
    // Predicated region
    $region10: #{_fwd.1} parent=1 // pred_check
      _
    $region11: #{_fwd.1} parent=1 // pred_check_branch
      %27 = sbr.rel (0) target = $region13
    $region12: #{_fwd.1} parent=1 // pred_region
      _
    $region13: #{_fwd.1} parent=1 // pred_fallthru
      _
    // Predicated region
    $region14: #{_fwd.1} parent=1 // pred_check
      _
    $region15: #{_fwd.1} parent=1 // pred_check_branch
      %29 = sbr.rel (0) target = $region17
    $region16: #{_fwd.1} parent=1 // pred_region
      %s31 = ssub.s32 1024, 1024
      %32 = vsyncadd [#allocation5], %s31
      %s33 = sshll.u32 [#allocation4], 4
      %s34 = int_to_ptr.vmem [resolvable:$true] %s33
      %39 = dma.hbm_to_vmem [thread:$0]  %s3, 1024, %s34, [#allocation5], 64, 64, 4
    $region17: #{_fwd.1} parent=1 // pred_fallthru
      _
    // Predicated region
    $region18: #{_fwd.1} parent=1 // pred_check
      _
    $region19: #{_fwd.1} parent=1 // pred_check_branch
      %41 = sbr.rel (0) target = $region21
    $region20: #{_fwd.1} parent=1 // pred_region
      _
    $region21: #{_fwd.1} parent=1 // pred_fallthru
      _
    // Predicated region
    $region22: #{_fwd.1} parent=1 // pred_check
      _
    $region23: #{_fwd.1} parent=1 // pred_check_branch
      %43 = sbr.rel (0) target = $region25
    $region24: #{_fwd.1} parent=1 // pred_region
      %44 = dma.done [#allocation3], 1024
    $region25: #{_fwd.1} parent=1 // pred_fallthru
      _
    // Predicated region
    $region26: #{_fwd.1} parent=1 // pred_check
      _
    $region27: #{_fwd.1} parent=1 // pred_check_branch
      %46 = sbr.rel (0) target = $region29
    $region28: #{_fwd.1} parent=1 // pred_region
      %47 = dma.done [#allocation5], 1024
    $region29: #{_fwd.1} parent=1 // pred_fallthru
      _
    %v49 = vld [vmem:[%s0] sm:$0xff]
    %v50 = vpack.c.bf16 %v49, %v49
    %v51 = vld [vmem:[#allocation2] sm:$0xf]
    %v52 = vld [vmem:[#allocation2 + $0x4] sm:$0xf]
    %v53 = vld [vmem:[#allocation2 + $0x8] sm:$0xf]
    %v54 = vld [vmem:[#allocation2 + $0xc] sm:$0xf]
    %v55 = vld [vmem:[#allocation2 + $0x10] sm:$0xf]
    %v56 = vld [vmem:[#allocation2 + $0x14] sm:$0xf]
    %v57 = vld [vmem:[#allocation2 + $0x18] sm:$0xf]
    %v58 = vld [vmem:[#allocation2 + $0x1c] sm:$0xf]
    %v59 = vld [vmem:[#allocation2 + $0x20] sm:$0xf]
    %v60 = vld [vmem:[#allocation2 + $0x24] sm:$0xf]
    %v61 = vld [vmem:[#allocation2 + $0x28] sm:$0xf]
    %v62 = vld [vmem:[#allocation2 + $0x2c] sm:$0xf]
    %v63 = vld [vmem:[#allocation2 + $0x30] sm:$0xf]
    %v64 = vld [vmem:[#allocation2 + $0x34] sm:$0xf]
    %v65 = vld [vmem:[#allocation2 + $0x38] sm:$0xf]
    %v66 = vld [vmem:[#allocation2 + $0x3c] sm:$0xf]
    %v67 = vld [vmem:[%s2] sm:$0x1]
    %v69 = vlaneseq
    %v70 = vshrl.u32 %v69, 7
    %v71 = vsub.s32 0, %v70
    %v72 = vrot.slane %v67, %v71
    %v90 = vunpack.c.l.b16 %v51
    %v91 = vunpack.c.l.b16 %v52
    %v92 = vunpack.c.l.b16 %v53
    %v93 = vunpack.c.l.b16 %v54
    %v94 = vunpack.c.l.b16 %v55
    %v95 = vunpack.c.l.b16 %v56
    %v96 = vunpack.c.l.b16 %v57
    %v97 = vunpack.c.l.b16 %v58
    %v98 = vunpack.c.l.b16 %v59
    %v99 = vunpack.c.l.b16 %v60
    %v100 = vunpack.c.l.b16 %v61
    %v101 = vunpack.c.l.b16 %v62
    %v102 = vunpack.c.l.b16 %v63
    %v103 = vunpack.c.l.b16 %v64
    %v104 = vunpack.c.l.b16 %v65
    %v105 = vunpack.c.l.b16 %v66
    %v106 = vpack.c.b16 %v91, %v90
    %v107 = vpack.c.b16 %v93, %v92
    %v108 = vpack.c.b16 %v95, %v94
    %v109 = vpack.c.b16 %v97, %v96
    %v110 = vpack.c.b16 %v99, %v98
    %v111 = vpack.c.b16 %v101, %v100
    %v112 = vpack.c.b16 %v103, %v102
    %v113 = vpack.c.b16 %v105, %v104
    %122 = vmatprep.subr.bf16.mxu0 0
    %123 = vmatpush1.bf16.msra.mxu0 %v113
    %124 = vmatprep.subr.bf16.mxu0 0
    %125 = vmatpush1.bf16.msra.mxu0 %v112
    %126 = vmatprep.subr.bf16.mxu0 0
    %127 = vmatpush1.bf16.msra.mxu0 %v111
    %128 = vmatprep.subr.bf16.mxu0 0
    %129 = vmatpush1.bf16.msra.mxu0 %v110
    %130 = vmatprep.subr.bf16.mxu0 0
    %131 = vmatpush1.bf16.msra.mxu0 %v109
    %132 = vmatprep.subr.bf16.mxu0 0
    %133 = vmatpush1.bf16.msra.mxu0 %v108
    %134 = vmatprep.subr.bf16.mxu0 0
    %135 = vmatpush1.bf16.msra.mxu0 %v107
    %136 = vmatprep.subr.bf16.mxu0 0
    %137 = vmatpush1.bf16.msra.mxu0 %v106
    %138 = vmatprep.subr.bf16.mxu0 0
    %139 = vmatpush2.bf16.msra.mxu0 0
    %140 = vmatprep.subr.bf16.mxu0 0
    %141 = vmatpush2.bf16.msra.mxu0 0
    %142 = vmatprep.subr.bf16.mxu0 0
    %143 = vmatpush2.bf16.msra.mxu0 0
    %144 = vmatprep.subr.bf16.mxu0 0
    %145 = vmatpush2.bf16.msra.mxu0 0
    %146 = vmatprep.subr.bf16.mxu0 0
    %147 = vmatpush2.bf16.msra.mxu0 0
    %148 = vmatprep.subr.bf16.mxu0 0
    %149 = vmatpush2.bf16.msra.mxu0 0
    %150 = vmatprep.subr.bf16.mxu0 0
    %151 = vmatpush2.bf16.msra.mxu0 0
    %152 = vmatprep.subr.bf16.mxu0 0
    %153 = vmatpush2.bf16.msra.mxu0 0
    %154 = vmatprep.mubr.bf16.mxu0 0
    %155 = vmatmul.mubr.bf16.gmra.mxu0 %v50
    %v156 = vpop.f32.mrf.mxu0
    %v157 = vadd.f32 %v72, %v156
    %v158 = vpop.f32.mrf.mxu0
    %v159 = vpop.f32.mrf.mxu0
    %v160 = vpop.f32.mrf.mxu0
    %161 = vdwg.mxu0
    %v162 = vmax.f32 %v157, 0.0
    %v163 = vpack.c.bf16 %v162, %v162
    %v164 = vld [vmem:[#allocation4] sm:$0xf]
    %v165 = vld [vmem:[#allocation4 + $0x4] sm:$0xf]
    %v166 = vld [vmem:[#allocation4 + $0x8] sm:$0xf]
    %v167 = vld [vmem:[#allocation4 + $0xc] sm:$0xf]
    %v168 = vld [vmem:[#allocation4 + $0x10] sm:$0xf]
    %v169 = vld [vmem:[#allocation4 + $0x14] sm:$0xf]
    %v170 = vld [vmem:[#allocation4 + $0x18] sm:$0xf]
    %v171 = vld [vmem:[#allocation4 + $0x1c] sm:$0xf]
    %v172 = vld [vmem:[#allocation4 + $0x20] sm:$0xf]
    %v173 = vld [vmem:[#allocation4 + $0x24] sm:$0xf]
    %v174 = vld [vmem:[#allocation4 + $0x28] sm:$0xf]
    %v175 = vld [vmem:[#allocation4 + $0x2c] sm:$0xf]
    %v176 = vld [vmem:[#allocation4 + $0x30] sm:$0xf]
    %v177 = vld [vmem:[#allocation4 + $0x34] sm:$0xf]
    %v178 = vld [vmem:[#allocation4 + $0x38] sm:$0xf]
    %v179 = vld [vmem:[#allocation4 + $0x3c] sm:$0xf]
    %v180 = vld [vmem:[%s4] sm:$0x1]
    %v182 = vlaneseq
    %v183 = vshrl.u32 %v182, 7
    %v184 = vsub.s32 0, %v183
    %v185 = vrot.slane %v180, %v184
    %v203 = vunpack.c.l.b16 %v164
    %v204 = vunpack.c.l.b16 %v165
    %v205 = vunpack.c.l.b16 %v166
    %v206 = vunpack.c.l.b16 %v167
    %v207 = vunpack.c.l.b16 %v168
    %v208 = vunpack.c.l.b16 %v169
    %v209 = vunpack.c.l.b16 %v170
    %v210 = vunpack.c.l.b16 %v171
    %v211 = vunpack.c.l.b16 %v172
    %v212 = vunpack.c.l.b16 %v173
    %v213 = vunpack.c.l.b16 %v174
    %v214 = vunpack.c.l.b16 %v175
    %v215 = vunpack.c.l.b16 %v176
    %v216 = vunpack.c.l.b16 %v177
    %v217 = vunpack.c.l.b16 %v178
    %v218 = vunpack.c.l.b16 %v179
    %v219 = vpack.c.b16 %v204, %v203
    %v220 = vpack.c.b16 %v206, %v205
    %v221 = vpack.c.b16 %v208, %v207
    %v222 = vpack.c.b16 %v210, %v209
    %v223 = vpack.c.b16 %v212, %v211
    %v224 = vpack.c.b16 %v214, %v213
    %v225 = vpack.c.b16 %v216, %v215
    %v226 = vpack.c.b16 %v218, %v217
    %235 = vmatprep.subr.bf16.mxu0 0
    %236 = vmatpush1.bf16.msra.mxu0 %v226
    %237 = vmatprep.subr.bf16.mxu0 0
    %238 = vmatpush1.bf16.msra.mxu0 %v225
    %239 = vmatprep.subr.bf16.mxu0 0
    %240 = vmatpush1.bf16.msra.mxu0 %v224
    %241 = vmatprep.subr.bf16.mxu0 0
    %242 = vmatpush1.bf16.msra.mxu0 %v223
    %243 = vmatprep.subr.bf16.mxu0 0
    %244 = vmatpush1.bf16.msra.mxu0 %v222
    %245 = vmatprep.subr.bf16.mxu0 0
    %246 = vmatpush1.bf16.msra.mxu0 %v221
    %247 = vmatprep.subr.bf16.mxu0 0
    %248 = vmatpush1.bf16.msra.mxu0 %v220
    %249 = vmatprep.subr.bf16.mxu0 0
    %250 = vmatpush1.bf16.msra.mxu0 %v219
    %251 = vmatprep.subr.bf16.mxu0 0
    %252 = vmatpush2.bf16.msra.mxu0 0
    %253 = vmatprep.subr.bf16.mxu0 0
    %254 = vmatpush2.bf16.msra.mxu0 0
    %255 = vmatprep.subr.bf16.mxu0 0
    %256 = vmatpush2.bf16.msra.mxu0 0
    %257 = vmatprep.subr.bf16.mxu0 0
    %258 = vmatpush2.bf16.msra.mxu0 0
    %259 = vmatprep.subr.bf16.mxu0 0
    %260 = vmatpush2.bf16.msra.mxu0 0
    %261 = vmatprep.subr.bf16.mxu0 0
    %262 = vmatpush2.bf16.msra.mxu0 0
    %263 = vmatprep.subr.bf16.mxu0 0
    %264 = vmatpush2.bf16.msra.mxu0 0
    %265 = vmatprep.subr.bf16.mxu0 0
    %266 = vmatpush2.bf16.msra.mxu0 0
    %267 = vmatprep.mubr.bf16.mxu0 0
    %268 = vmatmul.mubr.bf16.gmra.mxu0 %v163
    %v269 = vpop.f32.mrf.mxu0
    %v270 = vadd.f32 %v185, %v269
    %v271 = vpop.f32.mrf.mxu0
    %v272 = vpop.f32.mrf.mxu0
    %v273 = vpop.f32.mrf.mxu0
    %274 = vdwg.mxu0
    %275 = vst [vmem:[%s5] sm:$0xff] %v270
    // Predicated region
    $region30: #{_fwd.1} parent=1 // pred_check
      _
    $region31: #{_fwd.1} parent=1 // pred_check_branch
      %277 = sbr.rel (0) target = $region33
    $region32: #{_fwd.1} parent=1 // pred_region
      _
    $region33: #{_fwd.1} parent=1 // pred_fallthru
      _
    // Predicated region
    $region34: #{_fwd.1} parent=1 // pred_check
      _
    $region35: #{_fwd.1} parent=1 // pred_check_branch
      %279 = sbr.rel (0) target = $region37
    $region36: #{_fwd.1} parent=1 // pred_region
      _
    $region37: #{_fwd.1} parent=1 // pred_fallthru
      _
    %280 = vsyncpa [#allocation3], 1
    %281 = vsyncpa [#allocation5], 1

</llo_original>
